<compile_context>
chip_gen: v5e
topology: v5e:2x2
jax: 0.10.0
libtpu: 0.0.40
codegen_flags: <defaults>
</compile_context>

<pallas_src>
import functools

import jax
import jax.numpy as jnp
from jax.experimental import pallas as pl
from jax.experimental.pallas import tpu as pltpu


def _layernorm_kernel(x_ref, g_ref, b_ref, o_ref, *, eps, inv_c):
    # x_ref: (1, C, T)   g_ref/b_ref: (1, C, 1)   o_ref: (1, C, T)
    x = x_ref[...].astype(jnp.float32)
    g = g_ref[...].astype(jnp.float32)
    b = b_ref[...].astype(jnp.float32)

    # One-pass moments over the channel (sublane) axis.
    s = jnp.sum(x, axis=1, keepdims=True)          # (1, 1, T)
    sq = jnp.sum(x * x, axis=1, keepdims=True)     # (1, 1, T)
    mean = s * inv_c
    var = jnp.maximum(sq * inv_c - mean * mean, 0.0)

    # Reciprocal on the reduced tensor only (C x less divide work than
    # dividing the full (C, T) block).  PyTorch reference: no sqrt.
    inv = pl.reciprocal(var + eps, approx=False)   # (1, 1, T)

    o_ref[...] = ((x - mean) * inv * g + b).astype(o_ref.dtype)


def _round_up(x, m):
    return ((x + m - 1) // m) * m


def _choose_tile_hw(C, HW, max_block_bytes=2 * 1024 * 1024):
    """Lane-dense tile: multiple of 128, ~<=1024 lanes, block <= ~2 MiB."""
    hw128 = _round_up(HW, 128)
    tile = min(1024, hw128)
    cap = max(128, ((max_block_bytes // (4 * C)) // 128) * 128)
    return min(tile, cap)


def layernorm_nchw(x, g, b, eps=1e-5):
    """x: (N, C, H, W), g/b: (1, C, 1, 1). Returns (N, C, H, W)."""
    N, C, H, W = x.shape
    HW = H * W
    x3 = x.reshape(N, C, HW)
    g3 = g.reshape(1, C, 1)
    b3 = b.reshape(1, C, 1)

    tile_hw = _choose_tile_hw(C, HW)
    hw_pad = _round_up(HW, tile_hw)
    if hw_pad != HW:
        # Zero-pad the lane axis: keeps blocks lane-dense (unmasked stores).
        # Padded columns produce y = b (harmless); sliced off below.
        x3 = jnp.pad(x3, ((0, 0), (0, 0), (0, hw_pad - HW)))

    kernel = functools.partial(_layernorm_kernel, eps=eps, inv_c=1.0 / C)

    out = pl.pallas_call(
        kernel,
        out_shape=jax.ShapeDtypeStruct((N, C, hw_pad), x.dtype),
        grid_spec=pltpu.PrefetchScalarGridSpec(
            num_scalar_prefetch=0,
            grid=(N, hw_pad // tile_hw),
            in_specs=[
                pl.BlockSpec((1, C, tile_hw), lambda n, j: (n, 0, j)),
                pl.BlockSpec((1, C, 1), lambda n, j: (0, 0, 0)),
                pl.BlockSpec((1, C, 1), lambda n, j: (0, 0, 0)),
            ],
            out_specs=pl.BlockSpec((1, C, tile_hw), lambda n, j: (n, 0, j)),
        ),
        compiler_params=pltpu.CompilerParams(
            dimension_semantics=("parallel", "parallel"),
        ),
    )(x3, g3, b3)

    if hw_pad != HW:
        out = out[:, :, :HW]
    return out.reshape(N, C, H, W)


# TODO(synk): if C < 8 (f32) the sublane axis of every block is padded; a
# layout repack of spatial rows into sublanes would recover ~2x VMEM/VALU
# efficiency but is omitted here for clarity.

if __name__ == "__main__":
    key = jax.random.PRNGKey(0)
    N, C, H, W = 2, 4, 16, 16
    x = jax.random.normal(key, (N, C, H, W), dtype=jnp.float32)

    # Deterministic parameter init, matching nn.Parameter(torch.ones/zeros).
    g = jnp.ones((1, C, 1, 1), dtype=jnp.float32)
    b = jnp.zeros((1, C, 1, 1), dtype=jnp.float32)

    out = layernorm_nchw(x, g, b, eps=1e-5)
    out = jax.block_until_ready(out)

    # Pure-JAX reference (same formula as the PyTorch module, two-pass var).
    mean = jnp.mean(x, axis=1, keepdims=True)
    var = jnp.mean((x - mean) ** 2, axis=1, keepdims=True)
    ref = (x - mean) / (var + 1e-5) * g + b
    # Tolerance covers the one-pass (E[x^2] - mean^2) moment computation.
    assert jnp.allclose(out, ref, atol=1e-4, rtol=1e-4), "mismatch vs reference"

    print("KERNEL_OK")
</pallas_src>

<mosaic_0001>
module attributes {stable_mosaic.version = 11 : i64} {
  func.func @_layernorm_kernel(%arg0: i32, %arg1: i32, %arg2: memref<1x4x256xf32, #tpu.memory_space<vmem>>, %arg3: memref<1x4x1xf32, #tpu.memory_space<vmem>>, %arg4: memref<1x4x1xf32, #tpu.memory_space<vmem>>, %arg5: memref<1x4x256xf32, #tpu.memory_space<vmem>>) attributes {dimension_semantics = [#tpu.dimension_semantics<parallel>, #tpu.dimension_semantics<parallel>], iteration_bounds = array<i64: 2, 1>, scalar_prefetch = 0 : i64, scratch_operands = 0 : i64, tpu.core_type = #tpu.core_type<tc>, window_params = [{transform_indices = @transform_0, window_bounds = array<i64: 1, 4, 256>}, {pipeline_mode = #tpu.pipeline_mode<synchronous>, transform_indices = @transform_1, window_bounds = array<i64: 1, 4, 1>}, {pipeline_mode = #tpu.pipeline_mode<synchronous>, transform_indices = @transform_2, window_bounds = array<i64: 1, 4, 1>}, {transform_indices = @transform_3, window_bounds = array<i64: 1, 4, 256>}]} {
    %c0 = arith.constant 0 : index
    %c0_0 = arith.constant 0 : index
    %c0_1 = arith.constant 0 : index
    %0 = vector.load %arg2[%c0, %c0_0, %c0_1] : memref<1x4x256xf32, #tpu.memory_space<vmem>>, vector<1x4x256xf32>
    %c0_2 = arith.constant 0 : index
    %c0_3 = arith.constant 0 : index
    %c0_4 = arith.constant 0 : index
    %1 = vector.load %arg3[%c0_2, %c0_3, %c0_4] : memref<1x4x1xf32, #tpu.memory_space<vmem>>, vector<1x4x1xf32>
    %c0_5 = arith.constant 0 : index
    %c0_6 = arith.constant 0 : index
    %c0_7 = arith.constant 0 : index
    %2 = vector.load %arg4[%c0_5, %c0_6, %c0_7] : memref<1x4x1xf32, #tpu.memory_space<vmem>>, vector<1x4x1xf32>
    %cst = arith.constant dense<0.000000e+00> : vector<1x256xf32>
    %3 = vector.multi_reduction <add>, %0, %cst [1] : vector<1x4x256xf32> to vector<1x256xf32>
    %4 = vector.shape_cast %3 : vector<1x256xf32> to vector<1x1x256xf32>
    %5 = arith.mulf %0, %0 : vector<1x4x256xf32>
    %cst_8 = arith.constant dense<0.000000e+00> : vector<1x256xf32>
    %6 = vector.multi_reduction <add>, %5, %cst_8 [1] : vector<1x4x256xf32> to vector<1x256xf32>
    %7 = vector.shape_cast %6 : vector<1x256xf32> to vector<1x1x256xf32>
    %cst_9 = arith.constant 2.500000e-01 : f32
    %8 = vector.broadcast %cst_9 : f32 to vector<1x1x256xf32>
    %9 = arith.mulf %4, %8 : vector<1x1x256xf32>
    %cst_10 = arith.constant 2.500000e-01 : f32
    %10 = vector.broadcast %cst_10 : f32 to vector<1x1x256xf32>
    %11 = arith.mulf %7, %10 : vector<1x1x256xf32>
    %12 = arith.mulf %9, %9 : vector<1x1x256xf32>
    %13 = arith.subf %11, %12 : vector<1x1x256xf32>
    %cst_11 = arith.constant 0.000000e+00 : f32
    %14 = vector.broadcast %cst_11 : f32 to vector<1x1x256xf32>
    %15 = arith.maximumf %13, %14 : vector<1x1x256xf32>
    %cst_12 = arith.constant 9.99999974E-6 : f32
    %16 = vector.broadcast %cst_12 : f32 to vector<1x1x256xf32>
    %17 = arith.addf %15, %16 : vector<1x1x256xf32>
    %18 = tpu.reciprocal %17 : vector<1x1x256xf32> -> vector<1x1x256xf32>
    %19 = vector.broadcast %9 : vector<1x1x256xf32> to vector<1x4x256xf32>
    %20 = arith.subf %0, %19 : vector<1x4x256xf32>
    %21 = vector.broadcast %18 : vector<1x1x256xf32> to vector<1x4x256xf32>
    %22 = arith.mulf %20, %21 : vector<1x4x256xf32>
    %23 = vector.broadcast %1 : vector<1x4x1xf32> to vector<1x4x256xf32>
    %24 = arith.mulf %22, %23 : vector<1x4x256xf32>
    %25 = vector.broadcast %2 : vector<1x4x1xf32> to vector<1x4x256xf32>
    %26 = arith.addf %24, %25 : vector<1x4x256xf32>
    %c0_13 = arith.constant 0 : index
    %c0_14 = arith.constant 0 : index
    %c0_15 = arith.constant 0 : index
    %27 = vector.load %arg5[%c0_13, %c0_14, %c0_15] : memref<1x4x256xf32, #tpu.memory_space<vmem>>, vector<1x4x256xf32>
    tpu.vector_store %arg5[%c0_13, %c0_14, %c0_15], %26 {strides = array<i32>} : memref<1x4x256xf32, #tpu.memory_space<vmem>>, vector<1x4x256xf32>,
    return
  }
  func.func @transform_0(%arg0: i32, %arg1: i32) -> (i32, i32, i32) {
    %c0_i32 = arith.constant 0 : i32
    %c0_i32_0 = arith.constant 0 : i32
    return %arg0, %c0_i32, %arg1 : i32, i32, i32
  }
  func.func @transform_1(%arg0: i32, %arg1: i32) -> (i32, i32, i32) {
    %c0_i32 = arith.constant 0 : i32
    %c0_i32_0 = arith.constant 0 : i32
    %c0_i32_1 = arith.constant 0 : i32
    %c0_i32_2 = arith.constant 0 : i32
    return %c0_i32, %c0_i32_0, %c0_i32_1 : i32, i32, i32
  }
  func.func @transform_2(%arg0: i32, %arg1: i32) -> (i32, i32, i32) {
    %c0_i32 = arith.constant 0 : i32
    %c0_i32_0 = arith.constant 0 : i32
    %c0_i32_1 = arith.constant 0 : i32
    %c0_i32_2 = arith.constant 0 : i32
    return %c0_i32, %c0_i32_0, %c0_i32_1 : i32, i32, i32
  }
  func.func @transform_3(%arg0: i32, %arg1: i32) -> (i32, i32, i32) {
    %c0_i32 = arith.constant 0 : i32
    %c0_i32_0 = arith.constant 0 : i32
    return %arg0, %c0_i32, %arg1 : i32, i32, i32
  }
}

</mosaic_0001>

<llo_original>
// kernel: tpu_custom_call.1
$region0: #{tpu_custom_call.1}
  #allocation0 [shape = 'u32[]', space=smem, size = 0x4, offset = 0x4, fixed_abs, tag = 'smem constant byte address 0x4 - core index']
  #allocation1 [shape = 'u32[72,128]{1,0:T(1,128)}', space=vmem, size = 0x9000, scoped, tag = 'internal scratch']
  %s0 = inlined_call_operand.hbm [shape: f32[2,4,256], index: 0, kind: input, shape index: {}]
  %s1 = inlined_call_operand.vmem [shape: f32[1,4,1], index: 1, kind: input, shape index: {}]
  %s2 = inlined_call_operand.vmem [shape: f32[1,4,1], index: 2, kind: input, shape index: {}]
  %s3 = inlined_call_operand.hbm [shape: f32[2,4,256], index: 3, kind: output, shape index: {}]
  %s4 = sld [smem:[#allocation0]]
  $region49: #{tpu_custom_call.1} parent=0
    _
  %s6 = ssub.s32 1, %s4
  %s7 = scalar_select 0, %s6, %s4
  $region1: #{tpu_custom_call.1} parent=0
    #allocation2 [shape = 'u8[8192]{0}', space=vmem, size = 0x2000, scoped, tag = 'input window, operand 0']
    #allocation3 [shape = 's32[2]{0}', space=sflag, size = 0x8, scoped, tag = 'scoped memory for tpu_custom_call.1']
    #allocation4 [shape = 's32[2]{0}', space=sflag, size = 0x8, scoped, tag = 'scoped memory for tpu_custom_call.1']
    #allocation5 [shape = 'u8[8192]{0}', space=vmem, size = 0x2000, scoped, tag = 'output window, operand 0']
    %8 = vsyncpa [#allocation3], 0
    %s9 = scalar_lea.sflag [#allocation3], 1
    %10 = vsyncpa %s9, 0
    %11 = vsyncpa [#allocation4], 0
    %s12 = scalar_lea.sflag [#allocation4], 1
    %13 = vsyncpa %s12, 0
    loop: start=0, step=1, limit=4
    $region2: #{tpu_custom_call.1} parent=1 // loop_pre_header
      _
    $region3: #{tpu_custom_call.1} parent=1 // loop_header
      %s15 = sphi 0, %s19
      %p16 = scmp.ge.s32.totalorder %s15, 4
      %s22 = sphi 0, %s34
      %s23 = sphi 0, %s30
      %s24 = sphi 0, %s22
      %s25 = sphi 0, %s23
      %s26 = sphi 0, %s24
      %s27 = sphi 0, %s25
      %s39 = sphi 0, %s41
      %s42 = sphi 0, %s39
      %s43 = sphi 0, %s42
      %s59 = sphi 0, %s43
      %s63 = sphi 0, %s63
      %s65 = sphi 0, %s63
      %s66 = sphi 0, %s65
      %s80 = sphi 0, %s66
      %s84 = sphi 0, %s84
      %s86 = sphi 0, %s84
      %s87 = sphi 0, %s86
      %s101 = sphi 0, %s87
      %s109 = sphi 0, %s111
      %s112 = sphi 0, %s109
      %s113 = sphi 0, %s112
      %s129 = sphi 0, %s113
    $region4: #{tpu_custom_call.1} parent=1 // loop_header_branch
      %18 = sbr.rel (%p16) target = $region8
    $region5: #{tpu_custom_call.1} parent=1 // loop_body
      %s20 = ssub.s32 %s15, 1
      %s21 = ssub.s32 %s15, 2
      %s28 = sadd.s32 1, %s23
      %p29 = scmp.ge.s32.totalorder %s28, 1
      %s30 = scalar_select %p29, 0, %s28
      %s31 = sadd.s32 1, %s22
      %s32 = scalar_select %p29, %s31, %s22
      %p33 = scmp.ge.s32.totalorder %s32, 2
      %s34 = scalar_select %p33, 0, %s32
      %s35 = ssub.s32 %s22, %s34
      %s36 = ssub.s32 %s23, %s30
      %s37 = sor.u32 %s35, %s36
      %p38 = scmp.eq.s32.totalorder %s37, 0
      %s40 = sadd.s32 %s39, 1
      %s41 = scalar_select %p38, %s39, %s40
      %p44 = pneg %p38
      %p45 = scmp.eq.s32.totalorder %s15, 1
      %p46 = por %p44, %p45
      %p47 = scmp.ne.s32.totalorder %s39, %s42
      %p48 = scmp.eq.s32.totalorder %s15, 0
      %p49 = por %p47, %p48
      %p50 = scmp.ne.s32.totalorder %s39, %s42
      %p51 = scmp.eq.s32.totalorder %s20, 1
      %p52 = por %p50, %p51
      %p53 = scmp.ne.s32.totalorder %s42, %s43
      %p54 = scmp.eq.s32.totalorder %s20, 0
      %p55 = por %p53, %p54
      %p56 = scmp.ne.s32.totalorder %s42, %s43
      %p57 = scmp.eq.s32.totalorder %s21, 1
      %p58 = por %p56, %p57
      %p60 = scmp.ne.s32.totalorder %s43, %s59
      %p61 = scmp.eq.s32.totalorder %s21, 0
      %p62 = por %p60, %p61
      %s64 = sadd.s32 %s63, 1
      %p67 = scmp.eq.s32.totalorder %s15, 1
      %p68 = scmp.ne.s32.totalorder %s63, %s65
      %p69 = scmp.eq.s32.totalorder %s15, 0
      %p70 = por %p68, %p69
      %p71 = scmp.ne.s32.totalorder %s63, %s65
      %p72 = scmp.eq.s32.totalorder %s20, 1
      %p73 = por %p71, %p72
      %p74 = scmp.ne.s32.totalorder %s65, %s66
      %p75 = scmp.eq.s32.totalorder %s20, 0
      %p76 = por %p74, %p75
      %p77 = scmp.ne.s32.totalorder %s65, %s66
      %p78 = scmp.eq.s32.totalorder %s21, 1
      %p79 = por %p77, %p78
      %p81 = scmp.ne.s32.totalorder %s66, %s80
      %p82 = scmp.eq.s32.totalorder %s21, 0
      %p83 = por %p81, %p82
      %s85 = sadd.s32 %s84, 1
      %p88 = scmp.eq.s32.totalorder %s15, 1
      %p89 = scmp.ne.s32.totalorder %s84, %s86
      %p90 = scmp.eq.s32.totalorder %s15, 0
      %p91 = por %p89, %p90
      %p92 = scmp.ne.s32.totalorder %s84, %s86
      %p93 = scmp.eq.s32.totalorder %s20, 1
      %p94 = por %p92, %p93
      %p95 = scmp.ne.s32.totalorder %s86, %s87
      %p96 = scmp.eq.s32.totalorder %s20, 0
      %p97 = por %p95, %p96
      %p98 = scmp.ne.s32.totalorder %s86, %s87
      %p99 = scmp.eq.s32.totalorder %s21, 1
      %p100 = por %p98, %p99
      %p102 = scmp.ne.s32.totalorder %s87, %s101
      %p103 = scmp.eq.s32.totalorder %s21, 0
      %p104 = por %p102, %p103
      %s105 = ssub.s32 %s22, %s34
      %s106 = ssub.s32 %s23, %s30
      %s107 = sor.u32 %s105, %s106
      %p108 = scmp.eq.s32.totalorder %s107, 0
      %s110 = sadd.s32 %s109, 1
      %s111 = scalar_select %p108, %s109, %s110
      %p114 = pneg %p108
      %p115 = scmp.eq.s32.totalorder %s15, 1
      %p116 = por %p114, %p115
      %p117 = scmp.ne.s32.totalorder %s109, %s112
      %p118 = scmp.eq.s32.totalorder %s15, 0
      %p119 = por %p117, %p118
      %p120 = scmp.ne.s32.totalorder %s109, %s112
      %p121 = scmp.eq.s32.totalorder %s20, 1
      %p122 = por %p120, %p121
      %p123 = scmp.ne.s32.totalorder %s112, %s113
      %p124 = scmp.eq.s32.totalorder %s20, 0
      %p125 = por %p123, %p124
      %p126 = scmp.ne.s32.totalorder %s112, %s113
      %p127 = scmp.eq.s32.totalorder %s21, 1
      %p128 = por %p126, %p127
      %p130 = scmp.ne.s32.totalorder %s113, %s129
      %p131 = scmp.eq.s32.totalorder %s21, 0
      %p132 = por %p130, %p131
      %p133 = scmp.le.s32.totalorder 1, %s15
      %p134 = scmp.lt.s32.totalorder %s15, 3
      %p135 = pnand %p133, %p134
      %p136 = pneg %p135
      // Predicated region
      $region9: #{tpu_custom_call.1} parent=5 // pred_check
        _
      $region10: #{tpu_custom_call.1} parent=5 // pred_check_branch
        %138 = sbr.rel (%p135) target = $region12
      $region11: #{tpu_custom_call.1} parent=5 // pred_region
        %s139 = ssub.s32 %s15, 1
        // Predicated region
        $region13: #{tpu_custom_call.1} parent=11 // pred_check
          %p140 = pneg %p76
        $region14: #{tpu_custom_call.1} parent=11 // pred_check_branch
          %142 = sbr.rel (%p140) target = $region16
        $region15: #{tpu_custom_call.1} parent=11 // pred_region
          _
        $region16: #{tpu_custom_call.1} parent=11 // pred_fallthru
          _
        // Predicated region
        $region17: #{tpu_custom_call.1} parent=11 // pred_check
          %p143 = pneg %p97
        $region18: #{tpu_custom_call.1} parent=11 // pred_check_branch
          %145 = sbr.rel (%p143) target = $region20
        $region19: #{tpu_custom_call.1} parent=11 // pred_region
          _
        $region20: #{tpu_custom_call.1} parent=11 // pred_fallthru
          _
      $region12: #{tpu_custom_call.1} parent=5 // pred_fallthru
        _
      %p146 = scmp.lt.s32.totalorder %s15, 2
      // Predicated region
      $region21: #{tpu_custom_call.1} parent=5 // pred_check
        %p147 = pneg %p146
      $region22: #{tpu_custom_call.1} parent=5 // pred_check_branch
        %149 = sbr.rel (%p147) target = $region24
      $region23: #{tpu_custom_call.1} parent=5 // pred_region
        // Predicated region
        $region25: #{tpu_custom_call.1} parent=23 // pred_check
          %p150 = pneg %p49
        $region26: #{tpu_custom_call.1} parent=23 // pred_check_branch
          %152 = sbr.rel (%p150) target = $region28
        $region27: #{tpu_custom_call.1} parent=23 // pred_region
          %s153 = sand.u32 %s39, 1
          %s154 = scalar_lea.sflag [#allocation3], %s153
          %s155 = sand.u32 %s39, 1
          %s156 = smul.addr %s155, 8
          %s157 = scalar_lea.vmem [#allocation2], %s156
          %s158 = smul.u32 2, %s23
          %160 = vsyncadd %s154, 0
          %s161 = smul.addr %s22, 2
          %s162 = sadd.s32 %s158, %s161
          %s163 = smul.addr %s162, 4
          %s164 = scalar_lea.hbm %s0, %s163
          %s166 = sshll.u32 %s164, 4
          %s167 = int_to_ptr.hbm [resolvable:$true] %s166
          %s168 = sshll.u32 %s157, 4
          %s169 = int_to_ptr.vmem [resolvable:$true] %s168
          %171 = dma.hbm_to_vmem [thread:$0]  %s167, 128, %s169, %s154
        $region28: #{tpu_custom_call.1} parent=23 // pred_fallthru
          _
      $region24: #{tpu_custom_call.1} parent=5 // pred_fallthru
        _
      %p172 = scmp.le.s32.totalorder 1, %s15
      %p173 = scmp.lt.s32.totalorder %s15, 3
      %p174 = pnand %p172, %p173
      %p175 = pneg %p174
      // Predicated region
      $region29: #{tpu_custom_call.1} parent=5 // pred_check
        _
      $region30: #{tpu_custom_call.1} parent=5 // pred_check_branch
        %177 = sbr.rel (%p174) target = $region32
      $region31: #{tpu_custom_call.1} parent=5 // pred_region
        %s178 = ssub.s32 %s15, 1
        %s179 = sand.u32 %s42, 1
        %s180 = scalar_lea.sflag [#allocation3], %s179
        %s181 = sand.u32 %s42, 1
        %s182 = smul.addr %s181, 8
        %s183 = scalar_lea.vmem [#allocation2], %s182
        // Predicated region
        $region33: #{tpu_custom_call.1} parent=31 // pred_check
          %p184 = pneg %p55
        $region34: #{tpu_custom_call.1} parent=31 // pred_check_branch
          %186 = sbr.rel (%p184) target = $region36
        $region35: #{tpu_custom_call.1} parent=31 // pred_region
          %188 = dma.done %s180, 128
        $region36: #{tpu_custom_call.1} parent=31 // pred_fallthru
          _
        %s189 = sand.u32 %s42, 1
        %s190 = scalar_lea.sflag [#allocation3], %s189
        %s191 = sand.u32 %s42, 1
        %s192 = smul.addr %s191, 8
        %s193 = scalar_lea.vmem [#allocation2], %s192
        %p194 = pneg %p55
        %p195 = pneg %p52
        %p196 = pneg %p76
        %p197 = pneg %p73
        %p198 = pneg %p97
        %p199 = pneg %p94
        %p200 = pneg %p125
        %p201 = pneg %p122
        %s202 = sand.u32 %s112, 1
        %s203 = scalar_lea.sflag [#allocation4], %s202
        %s204 = sand.u32 %s112, 1
        %s205 = smul.addr %s204, 8
        %s206 = scalar_lea.vmem [#allocation5], %s205
        %s207 = smul.u32 2, %s25
        %s208 = smul.u32 2, %s25
        %v209 = vld [vmem:[%s183] sm:$0xff]
        %v210 = vld [vmem:[%s1] sm:$0xf]
        %v211 = vld [vmem:[%s2] sm:$0xf]
        %213 = vst [vmem:[#allocation1] ss:$2 sm:$0xff] %v209
        %v214 = vld.sshfl [vmem:[#allocation1] sm:$0xff pattern:$0x75316420]
        %v215 = vld.sshfl [vmem:[#allocation1 + $0x8] sm:$0xff pattern:$0x75316420]
        %vm218 = vcmask 1043456
        %v219 = vsel %vm218, %v214, 0.0
        %v220 = vrot.slane %v219, 4
        %v221 = vadd.f32 %v219, %v220
        %v222 = vrot.slane %v221, 2
        %v223 = vadd.f32 %v221, %v222
        %v224 = vrot.slane %v223, 1
        %v225 = vadd.f32 %v223, %v224
        %v226 = vsel %vm218, %v215, 0.0
        %v227 = vrot.slane %v226, 4
        %v228 = vadd.f32 %v226, %v227
        %v229 = vrot.slane %v228, 2
        %v230 = vadd.f32 %v228, %v229
        %v231 = vrot.slane %v230, 1
        %v232 = vadd.f32 %v230, %v231
        %v233 = vmul.f32 %v209, %v209
        %235 = vst [vmem:[#allocation1] ss:$2 sm:$0xff] %v233
        %v236 = vld.sshfl [vmem:[#allocation1] sm:$0xff pattern:$0x75316420]
        %v237 = vld.sshfl [vmem:[#allocation1 + $0x8] sm:$0xff pattern:$0x75316420]
        %v240 = vsel %vm218, %v236, 0.0
        %v241 = vrot.slane %v240, 4
        %v242 = vadd.f32 %v240, %v241
        %v243 = vrot.slane %v242, 2
        %v244 = vadd.f32 %v242, %v243
        %v245 = vrot.slane %v244, 1
        %v246 = vadd.f32 %v244, %v245
        %v247 = vsel %vm218, %v237, 0.0
        %v248 = vrot.slane %v247, 4
        %v249 = vadd.f32 %v247, %v248
        %v250 = vrot.slane %v249, 2
        %v251 = vadd.f32 %v249, %v250
        %v252 = vrot.slane %v251, 1
        %v253 = vadd.f32 %v251, %v252
        %v254 = vmul.f32 %v225, 0.25
        %v255 = vmul.f32 %v232, 0.25
        %v256 = vmul.f32 %v246, 0.25
        %v257 = vmul.f32 %v253, 0.25
        %v258 = vmul.f32 %v254, %v254
        %v259 = vmul.f32 %v255, %v255
        %v260 = vsub.f32 %v256, %v258
        %v261 = vsub.f32 %v257, %v259
        %v262 = vmax.f32 %v260, 0.0
        %v263 = vmax.f32 %v261, 0.0
        %v264 = vadd.f32 %v262, 1e-05
        %v265 = vadd.f32 %v263, 1e-05
        %v266 = vrcp.pop %v264
        %v267 = vmul.f32 %v264, %v266
        %v268 = vsub.f32 1.0, %v267
        %v269 = vmul.f32 %v266, %v268
        %v270 = vadd.f32 %v266, %v269
        %vm271 = vweird.f32 %v264
        %vm272 = vweird.f32 %v266
        %vm273 = vmor %vm271, %vm272
        %v274 = vsel %vm273, %v266, %v270
        %v275 = vand.u32 2147483647, %v264
        %vm276 = vcmp.eq.f32.partialorder %v275, 8.507059e+37
        %v277 = vand.u32 %v264, 2147483648
        %v278 = vor.u32 1.1754944e-38, %v277
        %v279 = vsel %vm276, %v278, %v274
        %v280 = vrcp.pop %v265
        %v281 = vmul.f32 %v265, %v280
        %v282 = vsub.f32 1.0, %v281
        %v283 = vmul.f32 %v280, %v282
        %v284 = vadd.f32 %v280, %v283
        %vm285 = vweird.f32 %v265
        %vm286 = vweird.f32 %v280
        %vm287 = vmor %vm285, %vm286
        %v288 = vsel %vm287, %v280, %v284
        %v289 = vand.u32 2147483647, %v265
        %vm290 = vcmp.eq.f32.partialorder %v289, 8.507059e+37
        %v291 = vand.u32 %v265, 2147483648
        %v292 = vor.u32 1.1754944e-38, %v291
        %v293 = vsel %vm290, %v292, %v288
        %v296 = vrot.slane %v255, 4
        %v297 = vsel %vm218, %v254, %v296
        %v299 = vsub.f32 %v209, %v297
        %v302 = vrot.slane %v293, 4
        %v303 = vsel %vm218, %v279, %v302
        %v305 = vmul.f32 %v299, %v303
        %307 = vset.pattern.permute.xlu0 0
        %308 = vperm.xlu0 %307, %v210
        %v309 = vpop.permute.xlu0 %308
        %v311 = vunpack.c.l.s4 839922192
        %v312 = vunpack.c.0.s8 %v311
        %v313 = vperm.slane %v309, %v312
        %v315 = vmul.f32 %v305, %v313
        %317 = vset.pattern.permute.xlu0 0
        %318 = vperm.xlu0 %317, %v211
        %v319 = vpop.permute.xlu0 %318
        %v321 = vunpack.c.l.s4 839922192
        %v322 = vunpack.c.0.s8 %v321
        %v323 = vperm.slane %v319, %v322
        %v325 = vadd.f32 %v315, %v323
        %326 = vst [vmem:[%s206] sm:$0xff] %v325
        %s327 = sand.u32 %s112, 1
        %s328 = scalar_lea.sflag [#allocation4], %s327
        %s329 = sand.u32 %s112, 1
        %s330 = smul.addr %s329, 8
        %s331 = scalar_lea.vmem [#allocation5], %s330
        // Predicated region
        $region37: #{tpu_custom_call.1} parent=31 // pred_check
          %p332 = pneg %p122
        $region38: #{tpu_custom_call.1} parent=31 // pred_check_branch
          %334 = sbr.rel (%p332) target = $region40
        $region39: #{tpu_custom_call.1} parent=31 // pred_region
          %s335 = smul.u32 2, %s25
          %337 = vsyncadd %s328, 0
          %s338 = smul.addr %s24, 2
          %s339 = sadd.s32 %s335, %s338
          %s340 = smul.addr %s339, 4
          %s341 = scalar_lea.hbm %s3, %s340
          %s343 = sshll.u32 %s331, 4
          %s344 = int_to_ptr.vmem [resolvable:$true] %s343
          %s345 = sshll.u32 %s341, 4
          %s346 = int_to_ptr.hbm [resolvable:$true] %s345
          %348 = dma.vmem_to_hbm [thread:$0]  %s344, 128, %s346, %s328
        $region40: #{tpu_custom_call.1} parent=31 // pred_fallthru
          _
      $region32: #{tpu_custom_call.1} parent=5 // pred_fallthru
        _
      %p349 = scmp.le.s32.totalorder 2, %s15
      // Predicated region
      $region41: #{tpu_custom_call.1} parent=5 // pred_check
        %p350 = pneg %p349
      $region42: #{tpu_custom_call.1} parent=5 // pred_check_branch
        %352 = sbr.rel (%p350) target = $region44
      $region43: #{tpu_custom_call.1} parent=5 // pred_region
        %s353 = ssub.s32 %s15, 2
        // Predicated region
        $region45: #{tpu_custom_call.1} parent=43 // pred_check
          %p354 = pneg %p128
        $region46: #{tpu_custom_call.1} parent=43 // pred_check_branch
          %356 = sbr.rel (%p354) target = $region48
        $region47: #{tpu_custom_call.1} parent=43 // pred_region
          %s357 = sand.u32 %s113, 1
          %s358 = scalar_lea.sflag [#allocation4], %s357
          %s359 = sand.u32 %s113, 1
          %s360 = smul.addr %s359, 8
          %s361 = scalar_lea.vmem [#allocation5], %s360
          %363 = dma.done %s358, 128
        $region48: #{tpu_custom_call.1} parent=43 // pred_fallthru
          _
      $region44: #{tpu_custom_call.1} parent=5 // pred_fallthru
        _
    $region6: #{tpu_custom_call.1} parent=1 // loop_footer
      %s19 = sadd.s32 1, %s15
    $region7: #{tpu_custom_call.1} parent=1 // loop_footer_branch
      %14 = sbr.rel target = $region3
    $region8: #{tpu_custom_call.1} parent=1 // loop_exit
      _
    %364 = vsyncpa [#allocation3], 1
    %s365 = scalar_lea.sflag [#allocation3], 1
    %366 = vsyncpa %s365, 1
    %367 = vsyncpa [#allocation4], 1
    %s368 = scalar_lea.sflag [#allocation4], 1
    %369 = vsyncpa %s368, 1

</llo_original>
